<compile_context>
chip_gen: v7x
topology: tpu7x:2x2x1
jax: 0.10.0
libtpu: 0.0.40
codegen_flags: <defaults>
</compile_context>

<pallas_src>
import functools

import jax
import jax.numpy as jnp
from jax.experimental import pallas as pl
from jax.experimental.pallas import tpu as pltpu

_EPS = 1e-5  # nn.InstanceNorm2d default eps

# Tap order t = (dh+1)*3 + (dw+1) == kh*3 + kw, matching HWIO weight flattening.
_TAPS = tuple((dh, dw) for dh in (-1, 0, 1) for dw in (-1, 0, 1))


def _tap_masks(H, W):
    """(9, H*W) float32 validity masks for the 3x3 'same' conv taps."""
    idx = jnp.arange(H * W, dtype=jnp.int32)
    h = idx // W
    w = idx % W
    masks = []
    for dh, dw in _TAPS:
        m = (h + dh >= 0) & (h + dh < H) & (w + dw >= 0) & (w + dw < W)
        masks.append(m.astype(jnp.float32))
    return jnp.stack(masks, axis=0)


def _pick_block_batch(N, Cin, Cout):
    """Images per grid step: fill 8 sublanes, but keep grid >= 2 (megacore)."""
    target = max(1, 8 // max(1, min(Cin, Cout)))
    best = 1
    for cand in range(1, min(target, N) + 1):
        if N % cand == 0 and N // cand >= min(2, N):
            best = cand
    return best


def _block_weight(w_hwio, B):
    """HWIO conv weight -> (B*Cout, 9*B*Cin) block-diagonal-in-batch matrix.

    Column index t*(B*Cin) + b*Cin + ci matches the im2col stacking order
    (tap-major, then batch, then input channel) used inside the kernel.
    """
    Cin, Cout = w_hwio.shape[2], w_hwio.shape[3]
    w_t = w_hwio.reshape(9, Cin, Cout)                       # [t, ci, co]
    eye = jnp.eye(B, dtype=w_hwio.dtype)                     # [b, b2]
    wb = jnp.einsum("ab,tic->actbi", eye, w_t)               # [b, co, t, b2, ci]
    return wb.reshape(B * Cout, 9 * B * Cin)


def _conv3x3_mxu(inp, w_block, tap_masks, W):
    """3x3 'same' conv via im2col + one MXU matmul.

    inp:       (R, HW) f32 value, R = B_blk * C flattened channel planes.
    w_block:   (R_out, 9*R) f32 block-diagonal-in-batch weight.
    tap_masks: length-9 tuple; entry t is None (center tap) or a mask value
               broadcastable against (R, HW), zero where the tap reads
               outside the image (neutralizes pltpu.roll wrap-around).
    Returns (R_out, HW) f32.
    """
    R, HW = inp.shape
    planes = []
    for t, (dh, dw) in enumerate(_TAPS):
        d = dh * W + dw                         # flat-index offset of this tap
        if d == 0:
            shifted = inp                       # out[i] = inp[i]
        else:
            # out[i] = inp[i + d]; wrap-around zeroed by the mask below.
            shifted = pltpu.roll(inp, shift=(-d) % HW, axis=1)
        m = tap_masks[t]
        if m is not None:
            shifted = shifted * m
        planes.append(shifted)
    stacked = jnp.concatenate(planes, axis=0)   # (9*R, HW), sublane-aligned
    return jnp.dot(w_block, stacked, preferred_element_type=jnp.float32)


def _afu_kernel(x_ref, w1_ref, w2_ref, gamma_ref, beta_ref, mask_ref, o_ref, *,
                W, B, Cin, Cout):
    """Fused conv1 -> InstanceNorm(affine) -> ReLU -> conv2 -> ReLU for B images."""
    HW = mask_ref.shape[1]
    R_in, R_out = B * Cin, B * Cout

    x = x_ref[0].astype(jnp.float32)            # (B*Cin, HW)
    masks = mask_ref[...]                       # (9, HW)

    # Per-tap masks: center tap (t=4) is all ones -> skip its multiply.
    # Hoist the sublane broadcast once and reuse it across both convs.
    base = tuple(None if t == 4 else masks[t:t + 1, :] for t in range(9))
    tap_out = tuple(None if m is None else jnp.broadcast_to(m, (R_out, HW))
                    for m in base)
    tap_in = tap_out if R_in == R_out else base

    # conv1 (im2col + single MXU matmul)
    y = _conv3x3_mxu(x, w1_ref[...], tap_in, W)                 # (B*Cout, HW)

    # InstanceNorm (biased var, single-pass sum/sumsq) + affine + ReLU, fused.
    inv_hw = jnp.float32(1.0 / HW)
    mean = jnp.sum(y, axis=1, keepdims=True) * inv_hw           # (B*Cout, 1)
    meansq = jnp.sum(y * y, axis=1, keepdims=True) * inv_hw
    var = meansq - mean * mean
    scale = gamma_ref[...] * jax.lax.rsqrt(var + _EPS)          # gamma folded in
    shift = beta_ref[...] - mean * scale
    y = jnp.maximum(y * scale + shift, 0.0)

    # conv2 + ReLU
    z = _conv3x3_mxu(y, w2_ref[...], tap_out, W)
    o_ref[0] = jnp.maximum(z, 0.0).astype(o_ref.dtype)


@functools.partial(jax.jit, static_argnames=("block_batch",))
def afu_forward(x_nchw, w1, w2, gamma, beta, block_batch=None):
    """AFU forward. x_nchw: (N, Cin, H, W) f32; w1/w2 HWIO. Returns (N, Cout, H, W)."""
    N, Cin, H, W = x_nchw.shape
    Cout = w1.shape[-1]
    HW = H * W
    B = block_batch if block_batch is not None else _pick_block_batch(N, Cin, Cout)
    assert N % B == 0, "block_batch must divide the batch size"
    G = N // B

    # Free row-major reshape: each grid step sees a contiguous (B*Cin, HW) slab.
    x_blk = x_nchw.reshape(G, B * Cin, HW)
    w1_blk = _block_weight(w1, B)                        # (B*Cout, 9*B*Cin)
    w2_blk = _block_weight(w2, B)                        # (B*Cout, 9*B*Cout)
    gamma_blk = jnp.tile(gamma.reshape(-1), (B,)).reshape(B * Cout, 1)
    beta_blk = jnp.tile(beta.reshape(-1), (B,)).reshape(B * Cout, 1)
    masks = _tap_masks(H, W)                             # (9, HW)

    flops = 2 * 9 * HW * N * (Cin * Cout + Cout * Cout)
    bytes_accessed = 4 * (N * Cin * HW + N * Cout * HW + w1_blk.size
                          + w2_blk.size + masks.size + 2 * B * Cout)
    cost = pl.CostEstimate(flops=flops, transcendentals=N * Cout,
                           bytes_accessed=bytes_accessed)

    kernel = functools.partial(_afu_kernel, W=W, B=B, Cin=Cin, Cout=Cout)
    out = pl.pallas_call(
        kernel,
        out_shape=jax.ShapeDtypeStruct((G, B * Cout, HW), jnp.float32),
        grid=(G,),
        in_specs=[
            pl.BlockSpec((1, B * Cin, HW), lambda n: (n, 0, 0)),
            pl.BlockSpec((B * Cout, 9 * B * Cin), lambda n: (0, 0)),
            pl.BlockSpec((B * Cout, 9 * B * Cout), lambda n: (0, 0)),
            pl.BlockSpec((B * Cout, 1), lambda n: (0, 0)),
            pl.BlockSpec((B * Cout, 1), lambda n: (0, 0)),
            pl.BlockSpec((9, HW), lambda n: (0, 0)),
        ],
        out_specs=pl.BlockSpec((1, B * Cout, HW), lambda n: (n, 0, 0)),
        compiler_params=pltpu.CompilerParams(
            dimension_semantics=("parallel",)),
        cost_estimate=cost,
    )(x_blk, w1_blk, w2_blk, gamma_blk, beta_blk, masks)
    return out.reshape(N, Cout, H, W)


def afu_reference(x_nchw, w1, w2, gamma, beta):
    """Pure-JAX reference mirroring the PyTorch module semantics."""
    x = jnp.transpose(x_nchw, (0, 2, 3, 1))
    dn = ("NHWC", "HWIO", "NHWC")
    y = jax.lax.conv_general_dilated(x, w1, (1, 1), "SAME", dimension_numbers=dn)
    mean = jnp.mean(y, axis=(1, 2), keepdims=True)
    var = jnp.mean((y - mean) ** 2, axis=(1, 2), keepdims=True)
    y = (y - mean) * jax.lax.rsqrt(var + _EPS)
    y = y * gamma.reshape(1, 1, 1, -1) + beta.reshape(1, 1, 1, -1)
    y = jnp.maximum(y, 0.0)
    z = jax.lax.conv_general_dilated(y, w2, (1, 1), "SAME", dimension_numbers=dn)
    z = jnp.maximum(z, 0.0)
    return jnp.transpose(z, (0, 3, 1, 2))


if __name__ == "__main__":
    N, Cin, H, W = 4, 4, 16, 16
    Cout = Cin  # AFU default: out_channels = in_channels

    key = jax.random.PRNGKey(0)
    kx, kw1, kw2 = jax.random.split(key, 3)

    x = jax.random.normal(kx, (N, Cin, H, W), dtype=jnp.float32)
    # Deterministic synthetic parameters (HWIO conv weights, affine IN params).
    w1 = 0.1 * jax.random.normal(kw1, (3, 3, Cin, Cout), dtype=jnp.float32)
    w2 = 0.1 * jax.random.normal(kw2, (3, 3, Cout, Cout), dtype=jnp.float32)
    gamma = 1.0 + 0.1 * jnp.arange(Cout, dtype=jnp.float32)
    beta = 0.05 * jnp.arange(Cout, dtype=jnp.float32)

    out = afu_forward(x, w1, w2, gamma, beta)
    out = jax.block_until_ready(out)

    ref = afu_reference(x, w1, w2, gamma, beta)
    if not jnp.allclose(out, ref, atol=1e-3, rtol=1e-3):
        raise AssertionError("Pallas AFU output does not match reference")

    print("KERNEL_OK")
</pallas_src>

<mosaic_0001>
module attributes {stable_mosaic.version = 11 : i64} {
  func.func @_afu_kernel(%arg0: i32, %arg1: memref<1x8x256xf32, #tpu.memory_space<vmem>>, %arg2: memref<8x72xf32, #tpu.memory_space<vmem>>, %arg3: memref<8x72xf32, #tpu.memory_space<vmem>>, %arg4: memref<8x1xf32, #tpu.memory_space<vmem>>, %arg5: memref<8x1xf32, #tpu.memory_space<vmem>>, %arg6: memref<9x256xf32, #tpu.memory_space<vmem>>, %arg7: memref<1x8x256xf32, #tpu.memory_space<vmem>>) attributes {dimension_semantics = [#tpu.dimension_semantics<parallel>], iteration_bounds = array<i64: 2>, scalar_prefetch = 0 : i64, scratch_operands = 0 : i64, tpu.core_type = #tpu.core_type<tc>, window_params = [{transform_indices = @transform_0, window_bounds = array<i64: 1, 8, 256>}, {pipeline_mode = #tpu.pipeline_mode<synchronous>, transform_indices = @transform_1, window_bounds = array<i64: 8, 72>}, {pipeline_mode = #tpu.pipeline_mode<synchronous>, transform_indices = @transform_2, window_bounds = array<i64: 8, 72>}, {pipeline_mode = #tpu.pipeline_mode<synchronous>, transform_indices = @transform_3, window_bounds = array<i64: 8, 1>}, {pipeline_mode = #tpu.pipeline_mode<synchronous>, transform_indices = @transform_4, window_bounds = array<i64: 8, 1>}, {pipeline_mode = #tpu.pipeline_mode<synchronous>, transform_indices = @transform_5, window_bounds = array<i64: 9, 256>}, {transform_indices = @transform_6, window_bounds = array<i64: 1, 8, 256>}]} {
    %c0 = arith.constant 0 : index
    %c0_0 = arith.constant 0 : index
    %c0_1 = arith.constant 0 : index
    %0 = vector.load %arg1[%c0, %c0_0, %c0_1] : memref<1x8x256xf32, #tpu.memory_space<vmem>>, vector<1x8x256xf32>
    %1 = vector.shape_cast %0 : vector<1x8x256xf32> to vector<8x256xf32>
    %c0_2 = arith.constant 0 : index
    %c0_3 = arith.constant 0 : index
    %2 = vector.load %arg6[%c0_2, %c0_3] : memref<9x256xf32, #tpu.memory_space<vmem>>, vector<9x256xf32>
    %3 = vector.extract_strided_slice %2 {offsets = [0, 0], sizes = [1, 256], strides = [1, 1]} : vector<9x256xf32> to vector<1x256xf32>
    %4 = vector.extract_strided_slice %2 {offsets = [1, 0], sizes = [1, 256], strides = [1, 1]} : vector<9x256xf32> to vector<1x256xf32>
    %5 = vector.extract_strided_slice %2 {offsets = [2, 0], sizes = [1, 256], strides = [1, 1]} : vector<9x256xf32> to vector<1x256xf32>
    %6 = vector.extract_strided_slice %2 {offsets = [3, 0], sizes = [1, 256], strides = [1, 1]} : vector<9x256xf32> to vector<1x256xf32>
    %7 = vector.extract_strided_slice %2 {offsets = [5, 0], sizes = [1, 256], strides = [1, 1]} : vector<9x256xf32> to vector<1x256xf32>
    %8 = vector.extract_strided_slice %2 {offsets = [6, 0], sizes = [1, 256], strides = [1, 1]} : vector<9x256xf32> to vector<1x256xf32>
    %9 = vector.extract_strided_slice %2 {offsets = [7, 0], sizes = [1, 256], strides = [1, 1]} : vector<9x256xf32> to vector<1x256xf32>
    %10 = vector.extract_strided_slice %2 {offsets = [8, 0], sizes = [1, 256], strides = [1, 1]} : vector<9x256xf32> to vector<1x256xf32>
    %11 = vector.shape_cast %3 : vector<1x256xf32> to vector<1x256xf32>
    %12 = vector.broadcast %11 : vector<1x256xf32> to vector<8x256xf32>
    %13 = vector.shape_cast %4 : vector<1x256xf32> to vector<1x256xf32>
    %14 = vector.broadcast %13 : vector<1x256xf32> to vector<8x256xf32>
    %15 = vector.shape_cast %5 : vector<1x256xf32> to vector<1x256xf32>
    %16 = vector.broadcast %15 : vector<1x256xf32> to vector<8x256xf32>
    %17 = vector.shape_cast %6 : vector<1x256xf32> to vector<1x256xf32>
    %18 = vector.broadcast %17 : vector<1x256xf32> to vector<8x256xf32>
    %19 = vector.shape_cast %7 : vector<1x256xf32> to vector<1x256xf32>
    %20 = vector.broadcast %19 : vector<1x256xf32> to vector<8x256xf32>
    %21 = vector.shape_cast %8 : vector<1x256xf32> to vector<1x256xf32>
    %22 = vector.broadcast %21 : vector<1x256xf32> to vector<8x256xf32>
    %23 = vector.shape_cast %9 : vector<1x256xf32> to vector<1x256xf32>
    %24 = vector.broadcast %23 : vector<1x256xf32> to vector<8x256xf32>
    %25 = vector.shape_cast %10 : vector<1x256xf32> to vector<1x256xf32>
    %26 = vector.broadcast %25 : vector<1x256xf32> to vector<8x256xf32>
    %c0_4 = arith.constant 0 : index
    %c0_5 = arith.constant 0 : index
    %27 = vector.load %arg2[%c0_4, %c0_5] : memref<8x72xf32, #tpu.memory_space<vmem>>, vector<8x72xf32>
    %c17_i32 = arith.constant 17 : i32
    %28 = tpu.dynamic_rotate %1 by %c17_i32 dim 1 : vector<8x256xf32>, i32 -> vector<8x256xf32>
    %29 = arith.mulf %28, %12 : vector<8x256xf32>
    %c16_i32 = arith.constant 16 : i32
    %30 = tpu.dynamic_rotate %1 by %c16_i32 dim 1 : vector<8x256xf32>, i32 -> vector<8x256xf32>
    %31 = arith.mulf %30, %14 : vector<8x256xf32>
    %c15_i32 = arith.constant 15 : i32
    %32 = tpu.dynamic_rotate %1 by %c15_i32 dim 1 : vector<8x256xf32>, i32 -> vector<8x256xf32>
    %33 = arith.mulf %32, %16 : vector<8x256xf32>
    %c1_i32 = arith.constant 1 : i32
    %34 = tpu.dynamic_rotate %1 by %c1_i32 dim 1 : vector<8x256xf32>, i32 -> vector<8x256xf32>
    %35 = arith.mulf %34, %18 : vector<8x256xf32>
    %c255_i32 = arith.constant 255 : i32
    %36 = tpu.dynamic_rotate %1 by %c255_i32 dim 1 : vector<8x256xf32>, i32 -> vector<8x256xf32>
    %37 = arith.mulf %36, %20 : vector<8x256xf32>
    %c241_i32 = arith.constant 241 : i32
    %38 = tpu.dynamic_rotate %1 by %c241_i32 dim 1 : vector<8x256xf32>, i32 -> vector<8x256xf32>
    %39 = arith.mulf %38, %22 : vector<8x256xf32>
    %c240_i32 = arith.constant 240 : i32
    %40 = tpu.dynamic_rotate %1 by %c240_i32 dim 1 : vector<8x256xf32>, i32 -> vector<8x256xf32>
    %41 = arith.mulf %40, %24 : vector<8x256xf32>
    %c239_i32 = arith.constant 239 : i32
    %42 = tpu.dynamic_rotate %1 by %c239_i32 dim 1 : vector<8x256xf32>, i32 -> vector<8x256xf32>
    %43 = arith.mulf %42, %26 : vector<8x256xf32>
    %44 = tpu.concatenate %29, %31, %33, %35, %1, %37, %39, %41, %43 in 0 : vector<8x256xf32>, vector<8x256xf32>, vector<8x256xf32>, vector<8x256xf32>, vector<8x256xf32>, vector<8x256xf32>, vector<8x256xf32>, vector<8x256xf32>, vector<8x256xf32> -> vector<72x256xf32>
    %cst = arith.constant dense<0.000000e+00> : vector<8x256xf32>
    %45 = tpu.matmul %27, %44, %cst {dimension_numbers = #tpu.dot_dimension_numbers<[1], [0], [0], [1], [0, 0, 1, 1], [], []>} : vector<8x72xf32>, vector<72x256xf32>, vector<8x256xf32> -> vector<8x256xf32>
    %cst_6 = arith.constant dense<0.000000e+00> : vector<8xf32>
    %46 = vector.multi_reduction <add>, %45, %cst_6 [1] : vector<8x256xf32> to vector<8xf32>
    %47 = vector.shape_cast %46 : vector<8xf32> to vector<8x1xf32>
    %cst_7 = arith.constant 3.906250e-03 : f32
    %48 = vector.broadcast %cst_7 : f32 to vector<8x1xf32>
    %49 = arith.mulf %47, %48 : vector<8x1xf32>
    %50 = arith.mulf %45, %45 : vector<8x256xf32>
    %cst_8 = arith.constant dense<0.000000e+00> : vector<8xf32>
    %51 = vector.multi_reduction <add>, %50, %cst_8 [1] : vector<8x256xf32> to vector<8xf32>
    %52 = vector.shape_cast %51 : vector<8xf32> to vector<8x1xf32>
    %cst_9 = arith.constant 3.906250e-03 : f32
    %53 = vector.broadcast %cst_9 : f32 to vector<8x1xf32>
    %54 = arith.mulf %52, %53 : vector<8x1xf32>
    %55 = arith.mulf %49, %49 : vector<8x1xf32>
    %56 = arith.subf %54, %55 : vector<8x1xf32>
    %c0_10 = arith.constant 0 : index
    %c0_11 = arith.constant 0 : index
    %57 = vector.load %arg4[%c0_10, %c0_11] : memref<8x1xf32, #tpu.memory_space<vmem>>, vector<8x1xf32>
    %cst_12 = arith.constant 9.99999974E-6 : f32
    %58 = vector.broadcast %cst_12 : f32 to vector<8x1xf32>
    %59 = arith.addf %56, %58 : vector<8x1xf32>
    %60 = math.rsqrt %59 : vector<8x1xf32>
    %61 = arith.mulf %57, %60 : vector<8x1xf32>
    %c0_13 = arith.constant 0 : index
    %c0_14 = arith.constant 0 : index
    %62 = vector.load %arg5[%c0_13, %c0_14] : memref<8x1xf32, #tpu.memory_space<vmem>>, vector<8x1xf32>
    %63 = arith.mulf %49, %61 : vector<8x1xf32>
    %64 = arith.subf %62, %63 : vector<8x1xf32>
    %65 = vector.broadcast %61 : vector<8x1xf32> to vector<8x256xf32>
    %66 = arith.mulf %45, %65 : vector<8x256xf32>
    %67 = vector.broadcast %64 : vector<8x1xf32> to vector<8x256xf32>
    %68 = arith.addf %66, %67 : vector<8x256xf32>
    %cst_15 = arith.constant 0.000000e+00 : f32
    %69 = vector.broadcast %cst_15 : f32 to vector<8x256xf32>
    %70 = arith.maximumf %68, %69 : vector<8x256xf32>
    %c0_16 = arith.constant 0 : index
    %c0_17 = arith.constant 0 : index
    %71 = vector.load %arg3[%c0_16, %c0_17] : memref<8x72xf32, #tpu.memory_space<vmem>>, vector<8x72xf32>
    %c17_i32_18 = arith.constant 17 : i32
    %72 = tpu.dynamic_rotate %70 by %c17_i32_18 dim 1 : vector<8x256xf32>, i32 -> vector<8x256xf32>
    %73 = arith.mulf %72, %12 : vector<8x256xf32>
    %c16_i32_19 = arith.constant 16 : i32
    %74 = tpu.dynamic_rotate %70 by %c16_i32_19 dim 1 : vector<8x256xf32>, i32 -> vector<8x256xf32>
    %75 = arith.mulf %74, %14 : vector<8x256xf32>
    %c15_i32_20 = arith.constant 15 : i32
    %76 = tpu.dynamic_rotate %70 by %c15_i32_20 dim 1 : vector<8x256xf32>, i32 -> vector<8x256xf32>
    %77 = arith.mulf %76, %16 : vector<8x256xf32>
    %c1_i32_21 = arith.constant 1 : i32
    %78 = tpu.dynamic_rotate %70 by %c1_i32_21 dim 1 : vector<8x256xf32>, i32 -> vector<8x256xf32>
    %79 = arith.mulf %78, %18 : vector<8x256xf32>
    %c255_i32_22 = arith.constant 255 : i32
    %80 = tpu.dynamic_rotate %70 by %c255_i32_22 dim 1 : vector<8x256xf32>, i32 -> vector<8x256xf32>
    %81 = arith.mulf %80, %20 : vector<8x256xf32>
    %c241_i32_23 = arith.constant 241 : i32
    %82 = tpu.dynamic_rotate %70 by %c241_i32_23 dim 1 : vector<8x256xf32>, i32 -> vector<8x256xf32>
    %83 = arith.mulf %82, %22 : vector<8x256xf32>
    %c240_i32_24 = arith.constant 240 : i32
    %84 = tpu.dynamic_rotate %70 by %c240_i32_24 dim 1 : vector<8x256xf32>, i32 -> vector<8x256xf32>
    %85 = arith.mulf %84, %24 : vector<8x256xf32>
    %c239_i32_25 = arith.constant 239 : i32
    %86 = tpu.dynamic_rotate %70 by %c239_i32_25 dim 1 : vector<8x256xf32>, i32 -> vector<8x256xf32>
    %87 = arith.mulf %86, %26 : vector<8x256xf32>
    %88 = tpu.concatenate %73, %75, %77, %79, %70, %81, %83, %85, %87 in 0 : vector<8x256xf32>, vector<8x256xf32>, vector<8x256xf32>, vector<8x256xf32>, vector<8x256xf32>, vector<8x256xf32>, vector<8x256xf32>, vector<8x256xf32>, vector<8x256xf32> -> vector<72x256xf32>
    %cst_26 = arith.constant dense<0.000000e+00> : vector<8x256xf32>
    %89 = tpu.matmul %71, %88, %cst_26 {dimension_numbers = #tpu.dot_dimension_numbers<[1], [0], [0], [1], [0, 0, 1, 1], [], []>} : vector<8x72xf32>, vector<72x256xf32>, vector<8x256xf32> -> vector<8x256xf32>
    %cst_27 = arith.constant 0.000000e+00 : f32
    %90 = vector.broadcast %cst_27 : f32 to vector<8x256xf32>
    %91 = arith.maximumf %89, %90 : vector<8x256xf32>
    %c0_28 = arith.constant 0 : index
    %c0_29 = arith.constant 0 : index
    %c0_30 = arith.constant 0 : index
    %92 = vector.load %arg7[%c0_28, %c0_29, %c0_30] : memref<1x8x256xf32, #tpu.memory_space<vmem>>, vector<1x8x256xf32>
    %93 = vector.shape_cast %92 : vector<1x8x256xf32> to vector<8x256xf32>
    %94 = vector.shape_cast %91 : vector<8x256xf32> to vector<1x8x256xf32>
    tpu.vector_store %arg7[%c0_28, %c0_29, %c0_30], %94 {strides = array<i32>} : memref<1x8x256xf32, #tpu.memory_space<vmem>>, vector<1x8x256xf32>,
    return
  }
  func.func @transform_0(%arg0: i32) -> (i32, i32, i32) {
    %c0_i32 = arith.constant 0 : i32
    %c0_i32_0 = arith.constant 0 : i32
    %c0_i32_1 = arith.constant 0 : i32
    return %arg0, %c0_i32, %c0_i32_0 : i32, i32, i32
  }
  func.func @transform_1(%arg0: i32) -> (i32, i32) {
    %c0_i32 = arith.constant 0 : i32
    %c0_i32_0 = arith.constant 0 : i32
    %c0_i32_1 = arith.constant 0 : i32
    return %c0_i32, %c0_i32_0 : i32, i32
  }
  func.func @transform_2(%arg0: i32) -> (i32, i32) {
    %c0_i32 = arith.constant 0 : i32
    %c0_i32_0 = arith.constant 0 : i32
    %c0_i32_1 = arith.constant 0 : i32
    return %c0_i32, %c0_i32_0 : i32, i32
  }
  func.func @transform_3(%arg0: i32) -> (i32, i32) {
    %c0_i32 = arith.constant 0 : i32
    %c0_i32_0 = arith.constant 0 : i32
    %c0_i32_1 = arith.constant 0 : i32
    return %c0_i32, %c0_i32_0 : i32, i32
  }
  func.func @transform_4(%arg0: i32) -> (i32, i32) {
    %c0_i32 = arith.constant 0 : i32
    %c0_i32_0 = arith.constant 0 : i32
    %c0_i32_1 = arith.constant 0 : i32
    return %c0_i32, %c0_i32_0 : i32, i32
  }
  func.func @transform_5(%arg0: i32) -> (i32, i32) {
    %c0_i32 = arith.constant 0 : i32
    %c0_i32_0 = arith.constant 0 : i32
    %c0_i32_1 = arith.constant 0 : i32
    return %c0_i32, %c0_i32_0 : i32, i32
  }
  func.func @transform_6(%arg0: i32) -> (i32, i32, i32) {
    %c0_i32 = arith.constant 0 : i32
    %c0_i32_0 = arith.constant 0 : i32
    %c0_i32_1 = arith.constant 0 : i32
    return %arg0, %c0_i32, %c0_i32_0 : i32, i32, i32
  }
}

</mosaic_0001>

<llo_original>
// kernel: tile.13
$region0: #{tile.13}
  #allocation0 [shape = 's32[1]{0}', space=sflag, size = 0x4, scoped, tag = 'scoped memory for tile.13']
  %s0 = inlined_call_operand.vmem [shape: f32[4], index: 0, kind: input, shape index: {}]
  %s1 = inlined_call_operand.vmem [shape: f32[2,4], index: 1, kind: output, shape index: {}]
  // Predicated region
  $region2: #{tile.13} parent=0 // pred_check
    _
  $region3: #{tile.13} parent=0 // pred_check_branch
    %3 = sbr.rel (0) target = $region5
  $region4: #{tile.13} parent=0 // pred_region
    _
  $region5: #{tile.13} parent=0 // pred_fallthru
    _
  %v4 = vld [vmem:[%s0] ss:$0 sm:$0xff]
  %5 = vst [vmem:[%s1] sm:$0x3] %v4

// kernel: tile.0
$region0: #{tile.0}
  %s0 = inlined_call_operand.vmem [shape: f32[2,4], index: 0, kind: input, shape index: {}]
  %s1 = inlined_call_operand.vmem [shape: f32[8,1], index: 1, kind: output, shape index: {}]
  $region1: #{tile.0} parent=0
    #allocation0 [shape = 'u8[4096]{0}', space=vmem, size = 0x1000, scoped, tag = 'scoped mem for input reshape']
    %s3 = sshllo.u32 0, 2
    %v4 = vld [vmem:[%s0] sm:%s3]
    %5 = vst [vmem:[#allocation0] sm:%s3] %v4
    %v6 = vld [vmem:[#allocation0] sm:$0x3]
    %vm7 = vcmask 7168
    %8 = vst.msk [vmem:[%s1] ss:$4 sm:$0x3] %vm7, %v6
    %v9 = vld [vmem:[#allocation0] sm:$0x3]
    %10 = vrot.lane.b32.xlu0 %v9, 127
    %v11 = vpop.permute.xlu0 %10
    %vm12 = vcmask 7168
    %s13 = scalar_lea.vmem %s1, 1
    %14 = vst.msk [vmem:[%s13] ss:$4 sm:$0x3] %vm12, %v11
    %v15 = vld [vmem:[#allocation0] sm:$0x3]
    %16 = vrot.lane.b32.xlu0 %v15, 126
    %v17 = vpop.permute.xlu0 %16
    %vm18 = vcmask 7168
    %s19 = scalar_lea.vmem %s1, 2
    %20 = vst.msk [vmem:[%s19] ss:$4 sm:$0x3] %vm18, %v17
    %v21 = vld [vmem:[#allocation0] sm:$0x3]
    %22 = vrot.lane.b32.xlu0 %v21, 125
    %v23 = vpop.permute.xlu0 %22
    %vm24 = vcmask 7168
    %s25 = scalar_lea.vmem %s1, 3
    %26 = vst.msk [vmem:[%s25] ss:$4 sm:$0x3] %vm24, %v23

// kernel: afu_forward.1
$region0: #{afu_forward.1}
  #allocation0 [shape = 'u32[]', space=smem, size = 0x4, offset = 0x4, fixed_abs, tag = 'smem constant byte address 0x4 - core index']
  #allocation1 [shape = 'u32[144,128]{1,0:T(1,128)}', space=vmem, size = 0x12000, scoped, tag = 'internal scratch']
  %s0 = inlined_call_operand.vmem [shape: f32[2,8,256], index: 0, kind: input, shape index: {}]
  %s1 = inlined_call_operand.vmem [shape: f32[8,72], index: 1, kind: input, shape index: {}]
  %s2 = inlined_call_operand.vmem [shape: f32[8,72], index: 2, kind: input, shape index: {}]
  %s3 = inlined_call_operand.vmem [shape: f32[8,1], index: 3, kind: input, shape index: {}]
  %s4 = inlined_call_operand.vmem [shape: f32[8,1], index: 4, kind: input, shape index: {}]
  %s5 = inlined_call_operand.vmem [shape: f32[9,256], index: 5, kind: input, shape index: {}]
  %s6 = inlined_call_operand.vmem [shape: f32[2,8,256], index: 6, kind: output, shape index: {}]
  %s7 = sld [smem:[#allocation0]]
  $region57: #{afu_forward.1} parent=0
    _
  %s9 = ssub.s32 1, %s7
  %s10 = scalar_select 0, %s9, %s7
  loop: start=0, step=1, limit=4
  $region2: #{afu_forward.1} parent=0 // loop_pre_header
    _
  $region3: #{afu_forward.1} parent=0 // loop_header
    %s12 = sphi 0, %s16
    %p13 = scmp.ge.s32.totalorder %s12, 4
    %s22 = sphi 0, %s24
    %s25 = sphi 0, %s22
    %s26 = sphi 0, %s25
    %s42 = sphi 0, %s26
    %s46 = sphi 0, %s46
    %s48 = sphi 0, %s46
    %s49 = sphi 0, %s48
    %s63 = sphi 0, %s49
    %s67 = sphi 0, %s67
    %s69 = sphi 0, %s67
    %s70 = sphi 0, %s69
    %s84 = sphi 0, %s70
    %s88 = sphi 0, %s88
    %s90 = sphi 0, %s88
    %s91 = sphi 0, %s90
    %s105 = sphi 0, %s91
    %s109 = sphi 0, %s109
    %s111 = sphi 0, %s109
    %s112 = sphi 0, %s111
    %s126 = sphi 0, %s112
    %s130 = sphi 0, %s130
    %s132 = sphi 0, %s130
    %s133 = sphi 0, %s132
    %s147 = sphi 0, %s133
    %s153 = sphi 0, %s155
    %s156 = sphi 0, %s153
    %s157 = sphi 0, %s156
    %s173 = sphi 0, %s157
  $region4: #{afu_forward.1} parent=0 // loop_header_branch
    %15 = sbr.rel (%p13) target = $region8
  $region5: #{afu_forward.1} parent=0 // loop_body
    %s17 = ssub.s32 %s12, 1
    %s18 = ssub.s32 %s12, 2
    %s19 = sadd.s32 %s12, 1
    %s20 = ssub.s32 %s12, %s19
    %p21 = scmp.eq.s32.totalorder %s20, 0
    %s23 = sadd.s32 %s22, 1
    %s24 = scalar_select %p21, %s22, %s23
    %p27 = pneg %p21
    %p28 = scmp.eq.s32.totalorder %s12, 1
    %p29 = por %p27, %p28
    %p30 = scmp.ne.s32.totalorder %s22, %s25
    %p31 = scmp.eq.s32.totalorder %s12, 0
    %p32 = por %p30, %p31
    %p33 = scmp.ne.s32.totalorder %s22, %s25
    %p34 = scmp.eq.s32.totalorder %s17, 1
    %p35 = por %p33, %p34
    %p36 = scmp.ne.s32.totalorder %s25, %s26
    %p37 = scmp.eq.s32.totalorder %s17, 0
    %p38 = por %p36, %p37
    %p39 = scmp.ne.s32.totalorder %s25, %s26
    %p40 = scmp.eq.s32.totalorder %s18, 1
    %p41 = por %p39, %p40
    %p43 = scmp.ne.s32.totalorder %s26, %s42
    %p44 = scmp.eq.s32.totalorder %s18, 0
    %p45 = por %p43, %p44
    %s47 = sadd.s32 %s46, 1
    %p50 = scmp.eq.s32.totalorder %s12, 1
    %p51 = scmp.ne.s32.totalorder %s46, %s48
    %p52 = scmp.eq.s32.totalorder %s12, 0
    %p53 = por %p51, %p52
    %p54 = scmp.ne.s32.totalorder %s46, %s48
    %p55 = scmp.eq.s32.totalorder %s17, 1
    %p56 = por %p54, %p55
    %p57 = scmp.ne.s32.totalorder %s48, %s49
    %p58 = scmp.eq.s32.totalorder %s17, 0
    %p59 = por %p57, %p58
    %p60 = scmp.ne.s32.totalorder %s48, %s49
    %p61 = scmp.eq.s32.totalorder %s18, 1
    %p62 = por %p60, %p61
    %p64 = scmp.ne.s32.totalorder %s49, %s63
    %p65 = scmp.eq.s32.totalorder %s18, 0
    %p66 = por %p64, %p65
    %s68 = sadd.s32 %s67, 1
    %p71 = scmp.eq.s32.totalorder %s12, 1
    %p72 = scmp.ne.s32.totalorder %s67, %s69
    %p73 = scmp.eq.s32.totalorder %s12, 0
    %p74 = por %p72, %p73
    %p75 = scmp.ne.s32.totalorder %s67, %s69
    %p76 = scmp.eq.s32.totalorder %s17, 1
    %p77 = por %p75, %p76
    %p78 = scmp.ne.s32.totalorder %s69, %s70
    %p79 = scmp.eq.s32.totalorder %s17, 0
    %p80 = por %p78, %p79
    %p81 = scmp.ne.s32.totalorder %s69, %s70
    %p82 = scmp.eq.s32.totalorder %s18, 1
    %p83 = por %p81, %p82
    %p85 = scmp.ne.s32.totalorder %s70, %s84
    %p86 = scmp.eq.s32.totalorder %s18, 0
    %p87 = por %p85, %p86
    %s89 = sadd.s32 %s88, 1
    %p92 = scmp.eq.s32.totalorder %s12, 1
    %p93 = scmp.ne.s32.totalorder %s88, %s90
    %p94 = scmp.eq.s32.totalorder %s12, 0
    %p95 = por %p93, %p94
    %p96 = scmp.ne.s32.totalorder %s88, %s90
    %p97 = scmp.eq.s32.totalorder %s17, 1
    %p98 = por %p96, %p97
    %p99 = scmp.ne.s32.totalorder %s90, %s91
    %p100 = scmp.eq.s32.totalorder %s17, 0
    %p101 = por %p99, %p100
    %p102 = scmp.ne.s32.totalorder %s90, %s91
    %p103 = scmp.eq.s32.totalorder %s18, 1
    %p104 = por %p102, %p103
    %p106 = scmp.ne.s32.totalorder %s91, %s105
    %p107 = scmp.eq.s32.totalorder %s18, 0
    %p108 = por %p106, %p107
    %s110 = sadd.s32 %s109, 1
    %p113 = scmp.eq.s32.totalorder %s12, 1
    %p114 = scmp.ne.s32.totalorder %s109, %s111
    %p115 = scmp.eq.s32.totalorder %s12, 0
    %p116 = por %p114, %p115
    %p117 = scmp.ne.s32.totalorder %s109, %s111
    %p118 = scmp.eq.s32.totalorder %s17, 1
    %p119 = por %p117, %p118
    %p120 = scmp.ne.s32.totalorder %s111, %s112
    %p121 = scmp.eq.s32.totalorder %s17, 0
    %p122 = por %p120, %p121
    %p123 = scmp.ne.s32.totalorder %s111, %s112
    %p124 = scmp.eq.s32.totalorder %s18, 1
    %p125 = por %p123, %p124
    %p127 = scmp.ne.s32.totalorder %s112, %s126
    %p128 = scmp.eq.s32.totalorder %s18, 0
    %p129 = por %p127, %p128
    %s131 = sadd.s32 %s130, 1
    %p134 = scmp.eq.s32.totalorder %s12, 1
    %p135 = scmp.ne.s32.totalorder %s130, %s132
    %p136 = scmp.eq.s32.totalorder %s12, 0
    %p137 = por %p135, %p136
    %p138 = scmp.ne.s32.totalorder %s130, %s132
    %p139 = scmp.eq.s32.totalorder %s17, 1
    %p140 = por %p138, %p139
    %p141 = scmp.ne.s32.totalorder %s132, %s133
    %p142 = scmp.eq.s32.totalorder %s17, 0
    %p143 = por %p141, %p142
    %p144 = scmp.ne.s32.totalorder %s132, %s133
    %p145 = scmp.eq.s32.totalorder %s18, 1
    %p146 = por %p144, %p145
    %p148 = scmp.ne.s32.totalorder %s133, %s147
    %p149 = scmp.eq.s32.totalorder %s18, 0
    %p150 = por %p148, %p149
    %s151 = ssub.s32 %s12, %s19
    %p152 = scmp.eq.s32.totalorder %s151, 0
    %s154 = sadd.s32 %s153, 1
    %s155 = scalar_select %p152, %s153, %s154
    %p158 = pneg %p152
    %p159 = scmp.eq.s32.totalorder %s12, 1
    %p160 = por %p158, %p159
    %p161 = scmp.ne.s32.totalorder %s153, %s156
    %p162 = scmp.eq.s32.totalorder %s12, 0
    %p163 = por %p161, %p162
    %p164 = scmp.ne.s32.totalorder %s153, %s156
    %p165 = scmp.eq.s32.totalorder %s17, 1
    %p166 = por %p164, %p165
    %p167 = scmp.ne.s32.totalorder %s156, %s157
    %p168 = scmp.eq.s32.totalorder %s17, 0
    %p169 = por %p167, %p168
    %p170 = scmp.ne.s32.totalorder %s156, %s157
    %p171 = scmp.eq.s32.totalorder %s18, 1
    %p172 = por %p170, %p171
    %p174 = scmp.ne.s32.totalorder %s157, %s173
    %p175 = scmp.eq.s32.totalorder %s18, 0
    %p176 = por %p174, %p175
    %p177 = scmp.le.s32.totalorder 1, %s12
    %p178 = scmp.lt.s32.totalorder %s12, 3
    %p179 = pnand %p177, %p178
    %p180 = pneg %p179
    // Predicated region
    $region9: #{afu_forward.1} parent=5 // pred_check
      _
    $region10: #{afu_forward.1} parent=5 // pred_check_branch
      %182 = sbr.rel (%p179) target = $region12
    $region11: #{afu_forward.1} parent=5 // pred_region
      %s183 = ssub.s32 %s12, 1
      // Predicated region
      $region13: #{afu_forward.1} parent=11 // pred_check
        %p184 = pneg %p59
      $region14: #{afu_forward.1} parent=11 // pred_check_branch
        %186 = sbr.rel (%p184) target = $region16
      $region15: #{afu_forward.1} parent=11 // pred_region
        _
      $region16: #{afu_forward.1} parent=11 // pred_fallthru
        _
      // Predicated region
      $region17: #{afu_forward.1} parent=11 // pred_check
        %p187 = pneg %p80
      $region18: #{afu_forward.1} parent=11 // pred_check_branch
        %189 = sbr.rel (%p187) target = $region20
      $region19: #{afu_forward.1} parent=11 // pred_region
        _
      $region20: #{afu_forward.1} parent=11 // pred_fallthru
        _
      // Predicated region
      $region21: #{afu_forward.1} parent=11 // pred_check
        %p190 = pneg %p101
      $region22: #{afu_forward.1} parent=11 // pred_check_branch
        %192 = sbr.rel (%p190) target = $region24
      $region23: #{afu_forward.1} parent=11 // pred_region
        _
      $region24: #{afu_forward.1} parent=11 // pred_fallthru
        _
      // Predicated region
      $region25: #{afu_forward.1} parent=11 // pred_check
        %p193 = pneg %p122
      $region26: #{afu_forward.1} parent=11 // pred_check_branch
        %195 = sbr.rel (%p193) target = $region28
      $region27: #{afu_forward.1} parent=11 // pred_region
        _
      $region28: #{afu_forward.1} parent=11 // pred_fallthru
        _
      // Predicated region
      $region29: #{afu_forward.1} parent=11 // pred_check
        %p196 = pneg %p143
      $region30: #{afu_forward.1} parent=11 // pred_check_branch
        %198 = sbr.rel (%p196) target = $region32
      $region31: #{afu_forward.1} parent=11 // pred_region
        _
      $region32: #{afu_forward.1} parent=11 // pred_fallthru
        _
    $region12: #{afu_forward.1} parent=5 // pred_fallthru
      _
    %p199 = scmp.lt.s32.totalorder %s12, 2
    // Predicated region
    $region33: #{afu_forward.1} parent=5 // pred_check
      %p200 = pneg %p199
    $region34: #{afu_forward.1} parent=5 // pred_check_branch
      %202 = sbr.rel (%p200) target = $region36
    $region35: #{afu_forward.1} parent=5 // pred_region
      // Predicated region
      $region37: #{afu_forward.1} parent=35 // pred_check
        %p203 = pneg %p32
      $region38: #{afu_forward.1} parent=35 // pred_check_branch
        %205 = sbr.rel (%p203) target = $region40
      $region39: #{afu_forward.1} parent=35 // pred_region
        %p206 = scmp.lt.s32.totalorder %s12, 1
        %s207 = scalar_select %p206, %s12, 1
        %s208 = smul.addr %s207, 2
        %s209 = smul.addr %s208, 8
        %s210 = scalar_lea.vmem %s0, %s209
      $region40: #{afu_forward.1} parent=35 // pred_fallthru
        _
    $region36: #{afu_forward.1} parent=5 // pred_fallthru
      _
    %p211 = scmp.le.s32.totalorder 1, %s12
    %p212 = scmp.lt.s32.totalorder %s12, 3
    %p213 = pnand %p211, %p212
    %p214 = pneg %p213
    // Predicated region
    $region41: #{afu_forward.1} parent=5 // pred_check
      _
    $region42: #{afu_forward.1} parent=5 // pred_check_branch
      %216 = sbr.rel (%p213) target = $region44
    $region43: #{afu_forward.1} parent=5 // pred_region
      %s217 = ssub.s32 %s12, 1
      %p218 = scmp.lt.s32.totalorder %s17, 1
      %s219 = scalar_select %p218, %s17, 1
      %s220 = smul.addr %s219, 2
      %s221 = smul.addr %s220, 8
      %s222 = scalar_lea.vmem %s0, %s221
      %p223 = pneg %p38
      %p224 = pneg %p35
      %p225 = pneg %p59
      %p226 = pneg %p56
      %p227 = pneg %p80
      %p228 = pneg %p77
      %p229 = pneg %p101
      %p230 = pneg %p98
      %p231 = pneg %p122
      %p232 = pneg %p119
      %p233 = pneg %p143
      %p234 = pneg %p140
      %p235 = pneg %p169
      %p236 = pneg %p166
      %p237 = scmp.lt.s32.totalorder %s17, 1
      %s238 = scalar_select %p237, %s17, 1
      %s239 = smul.addr %s238, 2
      %s240 = smul.addr %s239, 8
      %s241 = scalar_lea.vmem %s6, %s240
      %p242 = scmp.lt.s32.totalorder %s17, 1
      %s243 = scalar_select %p242, %s17, 1
      %s244 = smul.addr %s243, 2
      %s245 = smul.addr %s244, 8
      %s246 = scalar_lea.vmem %s0, %s245
      %p247 = scmp.lt.s32.totalorder %s17, 1
      %s248 = scalar_select %p247, %s17, 1
      %s249 = smul.addr %s248, 2
      %s250 = smul.addr %s249, 8
      %s251 = scalar_lea.vmem %s6, %s250
      %v252 = vld [vmem:[%s246] sm:$0xff]
      %v253 = vld [vmem:[%s246 + $0x8] sm:$0xff]
      %v254 = vld [vmem:[%s5] sm:$0xff]
      %v255 = vld [vmem:[%s5 + $0x8] sm:$0xff]
      %v256 = vld [vmem:[%s5 + $0x10] sm:$0x1]
      %v257 = vld [vmem:[%s5 + $0x18] sm:$0x1]
      %v258 = vlaneseq
      %v259 = vshrl.u32 %v258, 7
      %v260 = vsub.s32 0, %v259
      %v261 = vrot.slane %v254, %v260
      %v262 = vlaneseq
      %v263 = vshrl.u32 %v262, 7
      %v264 = vsub.s32 0, %v263
      %v265 = vrot.slane %v255, %v264
      %v266 = vlaneseq
      %v267 = vshrl.u32 %v266, 7
      %v268 = vsub.s32 1, %v267
      %v269 = vrot.slane %v254, %v268
      %v270 = vlaneseq
      %v271 = vshrl.u32 %v270, 7
      %v272 = vsub.s32 1, %v271
      %v273 = vrot.slane %v255, %v272
      %v274 = vlaneseq
      %v275 = vshrl.u32 %v274, 7
      %v276 = vsub.s32 2, %v275
      %v277 = vrot.slane %v254, %v276
      %v278 = vlaneseq
      %v279 = vshrl.u32 %v278, 7
      %v280 = vsub.s32 2, %v279
      %v281 = vrot.slane %v255, %v280
      %v282 = vlaneseq
      %v283 = vshrl.u32 %v282, 7
      %v284 = vsub.s32 3, %v283
      %v285 = vrot.slane %v254, %v284
      %v286 = vlaneseq
      %v287 = vshrl.u32 %v286, 7
      %v288 = vsub.s32 3, %v287
      %v289 = vrot.slane %v255, %v288
      %v290 = vlaneseq
      %v291 = vshrl.u32 %v290, 7
      %v292 = vsub.s32 5, %v291
      %v293 = vrot.slane %v254, %v292
      %v294 = vlaneseq
      %v295 = vshrl.u32 %v294, 7
      %v296 = vsub.s32 5, %v295
      %v297 = vrot.slane %v255, %v296
      %v298 = vlaneseq
      %v299 = vshrl.u32 %v298, 7
      %v300 = vsub.s32 6, %v299
      %v301 = vrot.slane %v254, %v300
      %v302 = vlaneseq
      %v303 = vshrl.u32 %v302, 7
      %v304 = vsub.s32 6, %v303
      %v305 = vrot.slane %v255, %v304
      %v306 = vlaneseq
      %v307 = vshrl.u32 %v306, 7
      %v308 = vsub.s32 7, %v307
      %v309 = vrot.slane %v254, %v308
      %v310 = vlaneseq
      %v311 = vshrl.u32 %v310, 7
      %v312 = vsub.s32 7, %v311
      %v313 = vrot.slane %v255, %v312
      %v314 = vlaneseq
      %v315 = vshrl.u32 %v314, 7
      %v316 = vsub.s32 0, %v315
      %v317 = vrot.slane %v256, %v316
      %v318 = vlaneseq
      %v319 = vshrl.u32 %v318, 7
      %v320 = vsub.s32 0, %v319
      %v321 = vrot.slane %v257, %v320
      %v322 = vld [vmem:[%s1] sm:$0xff]
      %323 = vrot.lane.b32.xlu0 %v252, 17
      %v324 = vpop.permute.xlu0 %323
      %325 = vrot.lane.b32.xlu0 %v253, 17
      %v326 = vpop.permute.xlu0 %325
      %v327 = vlaneseq
      %v328 = vand.u32 %v327, 127
      %vm329 = vcmp.lt.s32.totalorder %v328, 17
      %v330 = vsel %vm329, %v324, %v326
      %v331 = vsel %vm329, %v326, %v324
      %v332 = vmul.f32 %v331, %v261
      %v333 = vmul.f32 %v330, %v265
      %334 = vrot.lane.b32.xlu0 %v252, 16
      %v335 = vpop.permute.xlu0 %334
      %336 = vrot.lane.b32.xlu0 %v253, 16
      %v337 = vpop.permute.xlu0 %336
      %vm338 = vcmp.lt.s32.totalorder %v328, 16
      %v339 = vsel %vm338, %v335, %v337
      %v340 = vsel %vm338, %v337, %v335
      %v341 = vmul.f32 %v340, %v269
      %v342 = vmul.f32 %v339, %v273
      %343 = vrot.lane.b32.xlu0 %v252, 15
      %v344 = vpop.permute.xlu0 %343
      %345 = vrot.lane.b32.xlu0 %v253, 15
      %v346 = vpop.permute.xlu0 %345
      %vm347 = vcmp.lt.s32.totalorder %v328, 15
      %v348 = vsel %vm347, %v344, %v346
      %v349 = vsel %vm347, %v346, %v344
      %v350 = vmul.f32 %v349, %v277
      %v351 = vmul.f32 %v348, %v281
      %352 = vrot.lane.b32.xlu0 %v252, 1
      %v353 = vpop.permute.xlu0 %352
      %354 = vrot.lane.b32.xlu0 %v253, 1
      %v355 = vpop.permute.xlu0 %354
      %vm356 = vcmp.lt.s32.totalorder %v328, 1
      %v357 = vsel %vm356, %v353, %v355
      %v358 = vsel %vm356, %v355, %v353
      %v359 = vmul.f32 %v358, %v285
      %v360 = vmul.f32 %v357, %v289
      %361 = vrot.lane.b32.xlu0 %v252, 127
      %v362 = vpop.permute.xlu0 %361
      %363 = vrot.lane.b32.xlu0 %v253, 127
      %v364 = vpop.permute.xlu0 %363
      %vm365 = vcmp.lt.s32.totalorder %v328, 127
      %v366 = vsel %vm365, %v362, %v364
      %v367 = vsel %vm365, %v364, %v362
      %v368 = vmul.f32 %v366, %v293
      %v369 = vmul.f32 %v367, %v297
      %370 = vrot.lane.b32.xlu0 %v252, 113
      %v371 = vpop.permute.xlu0 %370
      %372 = vrot.lane.b32.xlu0 %v253, 113
      %v373 = vpop.permute.xlu0 %372
      %vm374 = vcmp.lt.s32.totalorder %v328, 113
      %v375 = vsel %vm374, %v371, %v373
      %v376 = vsel %vm374, %v373, %v371
      %v377 = vmul.f32 %v375, %v301
      %v378 = vmul.f32 %v376, %v305
      %379 = vrot.lane.b32.xlu0 %v252, 112
      %v380 = vpop.permute.xlu0 %379
      %381 = vrot.lane.b32.xlu0 %v253, 112
      %v382 = vpop.permute.xlu0 %381
      %vm383 = vcmp.lt.s32.totalorder %v328, 112
      %v384 = vsel %vm383, %v380, %v382
      %v385 = vsel %vm383, %v382, %v380
      %v386 = vmul.f32 %v384, %v309
      %v387 = vmul.f32 %v385, %v313
      %388 = vrot.lane.b32.xlu0 %v252, 111
      %v389 = vpop.permute.xlu0 %388
      %390 = vrot.lane.b32.xlu0 %v253, 111
      %v391 = vpop.permute.xlu0 %390
      %vm392 = vcmp.lt.s32.totalorder %v328, 111
      %v393 = vsel %vm392, %v389, %v391
      %v394 = vsel %vm392, %v391, %v389
      %v395 = vmul.f32 %v393, %v317
      %v396 = vmul.f32 %v394, %v321
      %vm397 = vcmask 588800
      %v399 = vsel %vm397, %v322, 0
      %401 = vmatprep.subr.mxu0 %v333
      %402 = vmatpush1.msra.mxu0 %v332
      %403 = vmatprep.subr.mxu0 %v342
      %404 = vmatpush1.msra.mxu0 %v341
      %405 = vmatprep.subr.mxu0 %v351
      %406 = vmatpush1.msra.mxu0 %v350
      %407 = vmatprep.subr.mxu0 %v360
      %408 = vmatpush1.msra.mxu0 %v359
      %409 = vmatprep.subr.mxu0 %v253
      %410 = vmatpush1.msra.mxu0 %v252
      %411 = vmatprep.subr.mxu0 %v369
      %412 = vmatpush1.msra.mxu0 %v368
      %413 = vmatprep.subr.mxu0 %v378
      %414 = vmatpush1.msra.mxu0 %v377
      %415 = vmatprep.subr.mxu0 %v387
      %416 = vmatpush1.msra.mxu0 %v386
      %417 = vmatprep.subr.mxu0 %v396
      %418 = vmatpush1.msra.mxu0 %v395
      %419 = vmatprep.subr.mxu0 0.0
      %420 = vmatpush1.msra.mxu0 0.0
      %421 = vmatprep.subr.mxu0 0.0
      %422 = vmatpush1.msra.mxu0 0.0
      %423 = vmatprep.subr.mxu0 0.0
      %424 = vmatpush1.msra.mxu0 0.0
      %425 = vmatprep.subr.mxu0 0.0
      %426 = vmatpush1.msra.mxu0 0.0
      %427 = vmatprep.subr.mxu0 0.0
      %428 = vmatpush1.msra.mxu0 0.0
      %429 = vmatprep.subr.mxu0 0.0
      %430 = vmatpush1.msra.mxu0 0.0
      %431 = vmatprep.subr.mxu0 0.0
      %432 = vmatpush1.msra.mxu0 0.0
      %433 = vmatprep.subr.mxu0 0.0
      %434 = vmatpush1.msra.mxu0 0.0
      %435 = vmatprep.subr.mxu0 0.0
      %436 = vmatpush1.msra.mxu0 0.0
      %437 = vmatprep.subr.mxu0 0.0
      %438 = vmatpush1.msra.mxu0 0.0
      %439 = vmatprep.subr.mxu0 0.0
      %440 = vmatpush1.msra.mxu0 0.0
      %441 = vmatprep.subr.mxu0 0.0
      %442 = vmatpush1.msra.mxu0 0.0
      %443 = vmatprep.subr.mxu0 0.0
      %444 = vmatpush1.msra.mxu0 0.0
      %445 = vmatprep.subr.mxu0 0.0
      %446 = vmatpush1.msra.mxu0 0.0
      %447 = vmatprep.subr.mxu0 0.0
      %448 = vmatpush1.msra.mxu0 0.0
      %449 = vmatprep.subr.mxu0 0.0
      %450 = vmatpush1.msra.mxu0 0.0
      %451 = vmatprep.subr.mxu0 0.0
      %452 = vmatpush1.msra.mxu0 0.0
      %453 = vmatprep.subr.mxu0 0.0
      %454 = vmatpush1.msra.mxu0 0.0
      %455 = vmatprep.subr.mxu0 0.0
      %456 = vmatpush1.msra.mxu0 0.0
      %457 = vmatprep.subr.mxu0 0.0
      %458 = vmatpush1.msra.mxu0 0.0
      %459 = vmatprep.subr.mxu0 0.0
      %460 = vmatpush1.msra.mxu0 0.0
      %461 = vmatprep.subr.mxu0 0.0
      %462 = vmatpush1.msra.mxu0 0.0
      %463 = vmatprep.subr.mxu0 0.0
      %464 = vmatpush1.msra.mxu0 0.0
      %465 = vmatprep.mubr.f32.mxu0 0.0
      %466 = vmatmul.mubr.f32.gmra.mrb[0].mxu0 %v399
      %v467 = vpop.f32.mrb[0].mxu0
      %v468 = vadd.f32 0.0, %v467
      %v469 = vpop.f32.mrb[0].mxu0
      %v470 = vadd.f32 0.0, %v469
      %471 = vdwg.mxu0
      %v472 = vadd.f32 %v468, %v470
      %473 = vadd.xlane.f32.xlu0 %v472
      %v474 = vpop.xlane.xlu0 %473
      %v475 = vmul.f32 %v474, 0.00390625
      %v476 = vmul.f32 %v468, %v468
      %v477 = vmul.f32 %v470, %v470
      %v478 = vadd.f32 %v476, %v477
      %479 = vadd.xlane.f32.xlu0 %v478
      %v480 = vpop.xlane.xlu0 %479
      %v481 = vmul.f32 %v480, 0.00390625
      %v482 = vmul.f32 %v475, %v475
      %v483 = vsub.f32 %v481, %v482
      %v484 = vld [vmem:[%s3] sm:$0xff]
      %v485 = vadd.f32 %v483, 1e-05
      %v486 = vrsqrt.pop %v485
      %v487 = vmul.f32 %v484, %v486
      %v488 = vld [vmem:[%s4] sm:$0xff]
      %v489 = vmul.f32 %v475, %v487
      %v490 = vsub.f32 %v488, %v489
      %492 = vset.pattern.permute.xlu0 0
      %493 = vperm.xlu0 %492, %v487
      %v494 = vpop.permute.xlu0 %493
      %v496 = vmul.f32 %v468, %v494
      %v497 = vmul.f32 %v470, %v494
      %499 = vset.pattern.permute.xlu0 0
      %500 = vperm.xlu0 %499, %v490
      %v501 = vpop.permute.xlu0 %500
      %v503 = vadd.f32 %v496, %v501
      %v504 = vadd.f32 %v497, %v501
      %v505 = vmax.f32 %v503, 0.0
      %v506 = vmax.f32 %v504, 0.0
      %v507 = vld [vmem:[%s2] sm:$0xff]
      %508 = vrot.lane.b32.xlu0 %v505, 17
      %v509 = vpop.permute.xlu0 %508
      %510 = vrot.lane.b32.xlu0 %v506, 17
      %v511 = vpop.permute.xlu0 %510
      %v512 = vsel %vm329, %v509, %v511
      %v513 = vsel %vm329, %v511, %v509
      %v514 = vmul.f32 %v513, %v261
      %v515 = vmul.f32 %v512, %v265
      %516 = vrot.lane.b32.xlu0 %v505, 16
      %v517 = vpop.permute.xlu0 %516
      %518 = vrot.lane.b32.xlu0 %v506, 16
      %v519 = vpop.permute.xlu0 %518
      %v520 = vsel %vm338, %v517, %v519
      %v521 = vsel %vm338, %v519, %v517
      %v522 = vmul.f32 %v521, %v269
      %v523 = vmul.f32 %v520, %v273
      %524 = vrot.lane.b32.xlu0 %v505, 15
      %v525 = vpop.permute.xlu0 %524
      %526 = vrot.lane.b32.xlu0 %v506, 15
      %v527 = vpop.permute.xlu0 %526
      %v528 = vsel %vm347, %v525, %v527
      %v529 = vsel %vm347, %v527, %v525
      %v530 = vmul.f32 %v529, %v277
      %v531 = vmul.f32 %v528, %v281
      %532 = vrot.lane.b32.xlu0 %v505, 1
      %v533 = vpop.permute.xlu0 %532
      %534 = vrot.lane.b32.xlu0 %v506, 1
      %v535 = vpop.permute.xlu0 %534
      %v536 = vsel %vm356, %v533, %v535
      %v537 = vsel %vm356, %v535, %v533
      %v538 = vmul.f32 %v537, %v285
      %v539 = vmul.f32 %v536, %v289
      %540 = vrot.lane.b32.xlu0 %v505, 127
      %v541 = vpop.permute.xlu0 %540
      %542 = vrot.lane.b32.xlu0 %v506, 127
      %v543 = vpop.permute.xlu0 %542
      %v544 = vsel %vm365, %v541, %v543
      %v545 = vsel %vm365, %v543, %v541
      %v546 = vmul.f32 %v544, %v293
      %v547 = vmul.f32 %v545, %v297
      %548 = vrot.lane.b32.xlu0 %v505, 113
      %v549 = vpop.permute.xlu0 %548
      %550 = vrot.lane.b32.xlu0 %v506, 113
      %v551 = vpop.permute.xlu0 %550
      %v552 = vsel %vm374, %v549, %v551
      %v553 = vsel %vm374, %v551, %v549
      %v554 = vmul.f32 %v552, %v301
      %v555 = vmul.f32 %v553, %v305
      %556 = vrot.lane.b32.xlu0 %v505, 112
      %v557 = vpop.permute.xlu0 %556
      %558 = vrot.lane.b32.xlu0 %v506, 112
      %v559 = vpop.permute.xlu0 %558
      %v560 = vsel %vm383, %v557, %v559
      %v561 = vsel %vm383, %v559, %v557
      %v562 = vmul.f32 %v560, %v309
      %v563 = vmul.f32 %v561, %v313
      %564 = vrot.lane.b32.xlu0 %v505, 111
      %v565 = vpop.permute.xlu0 %564
      %566 = vrot.lane.b32.xlu0 %v506, 111
      %v567 = vpop.permute.xlu0 %566
      %v568 = vsel %vm392, %v565, %v567
      %v569 = vsel %vm392, %v567, %v565
      %v570 = vmul.f32 %v568, %v317
      %v571 = vmul.f32 %v569, %v321
      %v573 = vsel %vm397, %v507, 0
      %575 = vmatprep.subr.mxu0 %v515
      %576 = vmatpush1.msra.mxu0 %v514
      %577 = vmatprep.subr.mxu0 %v523
      %578 = vmatpush1.msra.mxu0 %v522
      %579 = vmatprep.subr.mxu0 %v531
      %580 = vmatpush1.msra.mxu0 %v530
      %581 = vmatprep.subr.mxu0 %v539
      %582 = vmatpush1.msra.mxu0 %v538
      %583 = vmatprep.subr.mxu0 %v506
      %584 = vmatpush1.msra.mxu0 %v505
      %585 = vmatprep.subr.mxu0 %v547
      %586 = vmatpush1.msra.mxu0 %v546
      %587 = vmatprep.subr.mxu0 %v555
      %588 = vmatpush1.msra.mxu0 %v554
      %589 = vmatprep.subr.mxu0 %v563
      %590 = vmatpush1.msra.mxu0 %v562
      %591 = vmatprep.subr.mxu0 %v571
      %592 = vmatpush1.msra.mxu0 %v570
      %593 = vmatprep.subr.mxu0 0.0
      %594 = vmatpush1.msra.mxu0 0.0
      %595 = vmatprep.subr.mxu0 0.0
      %596 = vmatpush1.msra.mxu0 0.0
      %597 = vmatprep.subr.mxu0 0.0
      %598 = vmatpush1.msra.mxu0 0.0
      %599 = vmatprep.subr.mxu0 0.0
      %600 = vmatpush1.msra.mxu0 0.0
      %601 = vmatprep.subr.mxu0 0.0
      %602 = vmatpush1.msra.mxu0 0.0
      %603 = vmatprep.subr.mxu0 0.0
      %604 = vmatpush1.msra.mxu0 0.0
      %605 = vmatprep.subr.mxu0 0.0
      %606 = vmatpush1.msra.mxu0 0.0
      %607 = vmatprep.subr.mxu0 0.0
      %608 = vmatpush1.msra.mxu0 0.0
      %609 = vmatprep.subr.mxu0 0.0
      %610 = vmatpush1.msra.mxu0 0.0
      %611 = vmatprep.subr.mxu0 0.0
      %612 = vmatpush1.msra.mxu0 0.0
      %613 = vmatprep.subr.mxu0 0.0
      %614 = vmatpush1.msra.mxu0 0.0
      %615 = vmatprep.subr.mxu0 0.0
      %616 = vmatpush1.msra.mxu0 0.0
      %617 = vmatprep.subr.mxu0 0.0
      %618 = vmatpush1.msra.mxu0 0.0
      %619 = vmatprep.subr.mxu0 0.0
      %620 = vmatpush1.msra.mxu0 0.0
      %621 = vmatprep.subr.mxu0 0.0
      %622 = vmatpush1.msra.mxu0 0.0
      %623 = vmatprep.subr.mxu0 0.0
      %624 = vmatpush1.msra.mxu0 0.0
      %625 = vmatprep.subr.mxu0 0.0
      %626 = vmatpush1.msra.mxu0 0.0
      %627 = vmatprep.subr.mxu0 0.0
      %628 = vmatpush1.msra.mxu0 0.0
      %629 = vmatprep.subr.mxu0 0.0
      %630 = vmatpush1.msra.mxu0 0.0
      %631 = vmatprep.subr.mxu0 0.0
      %632 = vmatpush1.msra.mxu0 0.0
      %633 = vmatprep.subr.mxu0 0.0
      %634 = vmatpush1.msra.mxu0 0.0
      %635 = vmatprep.subr.mxu0 0.0
      %636 = vmatpush1.msra.mxu0 0.0
      %637 = vmatprep.subr.mxu0 0.0
      %638 = vmatpush1.msra.mxu0 0.0
      %639 = vmatprep.mubr.f32.mxu0 0.0
      %640 = vmatmul.mubr.f32.gmra.mrb[0].mxu0 %v573
      %v641 = vpop.f32.mrb[0].mxu0
      %v642 = vadd.f32 0.0, %v641
      %v643 = vpop.f32.mrb[0].mxu0
      %v644 = vadd.f32 0.0, %v643
      %645 = vdwg.mxu0
      %v646 = vmax.f32 %v642, 0.0
      %v647 = vmax.f32 %v644, 0.0
      %648 = vst [vmem:[%s251] sm:$0xff] %v646
      %649 = vst [vmem:[%s251 + $0x8] sm:$0xff] %v647
      %p650 = scmp.lt.s32.totalorder %s17, 1
      %s651 = scalar_select %p650, %s17, 1
      %s652 = smul.addr %s651, 2
      %s653 = smul.addr %s652, 8
      %s654 = scalar_lea.vmem %s6, %s653
      // Predicated region
      $region45: #{afu_forward.1} parent=43 // pred_check
        %p655 = pneg %p166
      $region46: #{afu_forward.1} parent=43 // pred_check_branch
        %657 = sbr.rel (%p655) target = $region48
      $region47: #{afu_forward.1} parent=43 // pred_region
        _
      $region48: #{afu_forward.1} parent=43 // pred_fallthru
        _
    $region44: #{afu_forward.1} parent=5 // pred_fallthru
      _
    %p658 = scmp.le.s32.totalorder 2, %s12
    // Predicated region
    $region49: #{afu_forward.1} parent=5 // pred_check
      %p659 = pneg %p658
    $region50: #{afu_forward.1} parent=5 // pred_check_branch
      %661 = sbr.rel (%p659) target = $region52
    $region51: #{afu_forward.1} parent=5 // pred_region
      %s662 = ssub.s32 %s12, 2
      // Predicated region
      $region53: #{afu_forward.1} parent=51 // pred_check
        %p663 = pneg %p172
      $region54: #{afu_forward.1} parent=51 // pred_check_branch
        %665 = sbr.rel (%p663) target = $region56
      $region55: #{afu_forward.1} parent=51 // pred_region
        %p666 = scmp.lt.s32.totalorder %s18, 1
        %s667 = scalar_select %p666, %s18, 1
        %s668 = smul.addr %s667, 2
        %s669 = smul.addr %s668, 8
        %s670 = scalar_lea.vmem %s6, %s669
      $region56: #{afu_forward.1} parent=51 // pred_fallthru
        _
    $region52: #{afu_forward.1} parent=5 // pred_fallthru
      _
  $region6: #{afu_forward.1} parent=0 // loop_footer
    %s16 = sadd.s32 1, %s12
  $region7: #{afu_forward.1} parent=0 // loop_footer_branch
    %11 = sbr.rel target = $region3
  $region8: #{afu_forward.1} parent=0 // loop_exit
    _

</llo_original>
